<compile_context>
chip_gen: v7x
topology: tpu7x:2x2x1
jax: 0.10.0
libtpu: 0.0.40
codegen_flags: <defaults>
</compile_context>

<pallas_src>
import jax
import jax.numpy as jnp
from jax.experimental import pallas as pl
from jax.experimental.pallas import tpu as pltpu


def _round_up(x, m):
    return ((x + m - 1) // m) * m


# ----------------------------------------------------------------------------
# Fused GEMM + folded-BN + SiLU kernel: silu((x @ w) * scale + bias)
# ----------------------------------------------------------------------------
def matmul_bn_silu(x, w, scale, bias, *, tm=256, tn=256, tk=512):
    """x: (M, K), w: (K, N), scale/bias: (N,). Returns (M, N) in x.dtype."""
    M, K = x.shape
    Kw, N = w.shape
    assert K == Kw
    out_dtype = x.dtype

    tm = min(tm, _round_up(M, 8))
    tn = min(tn, _round_up(N, 128))
    kt = tk if K > tk else _round_up(K, 8)
    Mp, Np, Kp = _round_up(M, tm), _round_up(N, tn), _round_up(K, kt)

    xp = x if (Mp, Kp) == (M, K) else jnp.pad(x, ((0, Mp - M), (0, Kp - K)))
    wp = w if (Kp, Np) == (K, N) else jnp.pad(w, ((0, Kp - K), (0, Np - N)))
    sp = jnp.pad(scale.reshape(1, N).astype(jnp.float32), ((0, 0), (0, Np - N)))
    bp = jnp.pad(bias.reshape(1, N).astype(jnp.float32), ((0, 0), (0, Np - N)))

    grid = (Mp // tm, Np // tn, Kp // kt)

    def kernel(x_ref, w_ref, s_ref, b_ref, o_ref, acc_ref):
        @pl.when(pl.program_id(2) == 0)
        def _():
            acc_ref[...] = jnp.zeros_like(acc_ref)

        acc_ref[...] += jnp.dot(x_ref[...], w_ref[...],
                                preferred_element_type=jnp.float32)

        @pl.when(pl.program_id(2) == pl.num_programs(2) - 1)
        def _():
            y = acc_ref[...] * s_ref[...] + b_ref[...]
            o_ref[...] = (y * (1.0 / (1.0 + jnp.exp(-y)))).astype(o_ref.dtype)

    out = pl.pallas_call(
        kernel,
        out_shape=jax.ShapeDtypeStruct((Mp, Np), out_dtype),
        grid_spec=pltpu.PrefetchScalarGridSpec(
            num_scalar_prefetch=0,
            grid=grid,
            in_specs=[
                pl.BlockSpec((tm, kt), lambda i, j, k: (i, k)),
                pl.BlockSpec((kt, tn), lambda i, j, k: (k, j)),
                pl.BlockSpec((1, tn), lambda i, j, k: (0, j)),
                pl.BlockSpec((1, tn), lambda i, j, k: (0, j)),
            ],
            out_specs=pl.BlockSpec((tm, tn), lambda i, j, k: (i, j)),
            scratch_shapes=[pltpu.VMEM((tm, tn), jnp.float32)],
        ),
        compiler_params=pltpu.CompilerParams(
            dimension_semantics=("parallel", "parallel", "arbitrary")),
    )(xp, wp, sp, bp)

    if (Mp, Np) != (M, N):
        out = out[:M, :N]
    return out


# ----------------------------------------------------------------------------
# 2x2 stride-2 max pool (NHWC), H/W even.
# ----------------------------------------------------------------------------
def maxpool2x2_nhwc(x, *, vmem_block_bytes=2 << 20):
    n, h, w, c = x.shape
    assert h % 2 == 0 and w % 2 == 0
    ho, wo = h // 2, w // 2
    # Row-major reshape is free: (n, h, w, c) -> (n, ho, 2, wo, 2*c).
    xr = x.reshape(n, ho, 2, wo, 2 * c)

    # Largest divisor of ho whose input block stays under the VMEM budget.
    row_bytes = 2 * w * c * x.dtype.itemsize
    tho = 1
    for d in range(ho, 0, -1):
        if ho % d == 0 and d * row_bytes <= vmem_block_bytes:
            tho = d
            break

    def kernel(x_ref, o_ref):
        v = x_ref[...]                                        # (1, tho, 2, wo, 2c)
        v = jnp.maximum(v[:, :, 0, :, :], v[:, :, 1, :, :])   # pool over H pairs
        o_ref[...] = jnp.maximum(v[..., :c], v[..., c:])      # pool over W pairs

    return pl.pallas_call(
        kernel,
        out_shape=jax.ShapeDtypeStruct((n, ho, wo, c), x.dtype),
        grid=(n, ho // tho),
        in_specs=[pl.BlockSpec((1, tho, 2, wo, 2 * c),
                               lambda i, j: (i, j, 0, 0, 0))],
        out_specs=pl.BlockSpec((1, tho, wo, c), lambda i, j: (i, j, 0, 0)),
        compiler_params=pltpu.CompilerParams(
            dimension_semantics=("parallel", "parallel")),
    )(xr)


# ----------------------------------------------------------------------------
# DownC forward
# ----------------------------------------------------------------------------
def _im2col_3x3(x_nhwc, stride):
    # TODO(synk): patch extraction / layout transposes stay in XLA; fold into a
    # fused shifted-window Pallas conv if this relayout ever becomes a bottleneck.
    n, h, w, c = x_nhwc.shape
    ho = (h + 2 - 3) // stride + 1
    wo = (w + 2 - 3) // stride + 1
    xp = jnp.pad(x_nhwc, ((0, 0), (1, 1), (1, 1), (0, 0)))
    cols = []
    for kh in range(3):
        for kw in range(3):
            cols.append(xp[:, kh:kh + stride * ho:stride,
                           kw:kw + stride * wo:stride, :])
    return jnp.concatenate(cols, axis=-1), ho, wo


def downc_forward(x_nchw, params, k=2):
    """Pallas DownC forward. x_nchw: (N, C1, H, W). Returns NCHW output."""
    assert k == 2, "max-pool kernel implements the module default k=2"
    (w1, s1, b1), (w2, s2, b2), (w3, s3, b3) = params
    n, c1, h, w = x_nchw.shape
    c_ = w1.shape[0]
    c2h = w2.shape[0]

    x_nhwc = jnp.transpose(x_nchw, (0, 2, 3, 1))

    # cv1: 1x1 Conv + BN + SiLU  (pointwise conv == GEMM over pixels)
    y1 = matmul_bn_silu(x_nhwc.reshape(n * h * w, c1),
                        w1.reshape(c_, c1).T, s1, b1)
    y1 = y1.reshape(n, h, w, c_)

    # cv2: 3x3 stride-k Conv + BN + SiLU via im2col + fused GEMM
    patches, ho, wo = _im2col_3x3(y1, stride=k)
    assert (ho, wo) == (h // 2, w // 2)
    w2_mat = jnp.transpose(w2, (2, 3, 1, 0)).reshape(9 * c_, c2h)
    y2 = matmul_bn_silu(patches.reshape(n * ho * wo, 9 * c_), w2_mat, s2, b2)
    y2 = y2.reshape(n, ho, wo, c2h)

    # cv3: 2x2 max pool -> 1x1 Conv + BN + SiLU
    xmp = maxpool2x2_nhwc(x_nhwc)
    y3 = matmul_bn_silu(xmp.reshape(n * ho * wo, c1),
                        w3.reshape(c2h, c1).T, s3, b3)
    y3 = y3.reshape(n, ho, wo, c2h)

    out = jnp.concatenate([y2, y3], axis=-1)        # channel concat on lane axis
    return jnp.transpose(out, (0, 3, 1, 2))         # back to NCHW


# ----------------------------------------------------------------------------
# Pure-JAX reference (matches PyTorch DownC with folded eval-mode BN)
# ----------------------------------------------------------------------------
def _conv_bn_silu_ref(x_nchw, w_oihw, scale, bias, stride, pad):
    y = jax.lax.conv_general_dilated(
        x_nchw, w_oihw, window_strides=(stride, stride),
        padding=((pad, pad), (pad, pad)),
        dimension_numbers=("NCHW", "OIHW", "NCHW"),
        precision=jax.lax.Precision.HIGHEST)
    y = y * scale[None, :, None, None] + bias[None, :, None, None]
    return y * jax.nn.sigmoid(y)


def downc_ref(x_nchw, params, k=2):
    (w1, s1, b1), (w2, s2, b2), (w3, s3, b3) = params
    y1 = _conv_bn_silu_ref(x_nchw, w1, s1, b1, 1, 0)
    y2 = _conv_bn_silu_ref(y1, w2, s2, b2, k, 1)
    xm = jax.lax.reduce_window(x_nchw, -jnp.inf, jax.lax.max,
                               (1, 1, k, k), (1, 1, k, k), "VALID")
    y3 = _conv_bn_silu_ref(xm, w3, s3, b3, 1, 0)
    return jnp.concatenate([y2, y3], axis=1)


if __name__ == "__main__":
    key = jax.random.PRNGKey(0)
    ks = jax.random.split(key, 16)

    # Small shapes consistent with the module: DownC(c1=4, c2=8, k=2), N=2, 16x16.
    n, c1, c2, h, w, k = 2, 4, 8, 16, 16, 2
    c_ = int(c1)
    c2h = c2 // 2

    def bn_fold(kg, kb, km, kv, c, eps=1e-5):
        gamma = 1.0 + 0.1 * jax.random.normal(kg, (c,), jnp.float32)
        beta = 0.1 * jax.random.normal(kb, (c,), jnp.float32)
        mean = 0.1 * jax.random.normal(km, (c,), jnp.float32)
        var = jnp.abs(jax.random.normal(kv, (c,), jnp.float32)) + 0.5
        scale = gamma * jax.lax.rsqrt(var + eps)
        bias = beta - mean * scale
        return scale, bias

    x = jax.random.normal(ks[0], (n, c1, h, w), dtype=jnp.float32)
    w1 = 0.3 * jax.random.normal(ks[1], (c_, c1, 1, 1), jnp.float32)
    w2 = 0.2 * jax.random.normal(ks[2], (c2h, c_, 3, 3), jnp.float32)
    w3 = 0.3 * jax.random.normal(ks[3], (c2h, c1, 1, 1), jnp.float32)
    s1, b1 = bn_fold(ks[4], ks[5], ks[6], ks[7], c_)
    s2, b2 = bn_fold(ks[8], ks[9], ks[10], ks[11], c2h)
    s3, b3 = bn_fold(ks[12], ks[13], ks[14], ks[15], c2h)
    params = ((w1, s1, b1), (w2, s2, b2), (w3, s3, b3))

    out = downc_forward(x, params, k=k)
    out = jax.block_until_ready(out)

    ref = downc_ref(x, params, k=k)
    assert out.shape == ref.shape == (n, c2, h // k, w // k), (out.shape, ref.shape)
    max_err = float(jnp.max(jnp.abs(out - ref)))
    assert jnp.allclose(out, ref, atol=1e-3, rtol=1e-3), ("mismatch", max_err)

    print("KERNEL_OK")
</pallas_src>

<mosaic_0001>
module attributes {stable_mosaic.version = 11 : i64} {
  func.func @kernel(%arg0: i32, %arg1: i32, %arg2: i32, %arg3: memref<256x8xf32, #tpu.memory_space<vmem>>, %arg4: memref<8x128xf32, #tpu.memory_space<vmem>>, %arg5: memref<1x128xf32, #tpu.memory_space<vmem>>, %arg6: memref<1x128xf32, #tpu.memory_space<vmem>>, %arg7: memref<256x128xf32, #tpu.memory_space<vmem>>, %arg8: memref<256x128xf32, #tpu.memory_space<vmem>>) attributes {dimension_semantics = [#tpu.dimension_semantics<parallel>, #tpu.dimension_semantics<parallel>, #tpu.dimension_semantics<arbitrary>], iteration_bounds = array<i64: 2, 1, 1>, scalar_prefetch = 0 : i64, scratch_operands = 1 : i64, tpu.core_type = #tpu.core_type<tc>, window_params = [{transform_indices = @transform_0, window_bounds = array<i64: 256, 8>}, {transform_indices = @transform_1, window_bounds = array<i64: 8, 128>}, {transform_indices = @transform_2, window_bounds = array<i64: 1, 128>}, {transform_indices = @transform_3, window_bounds = array<i64: 1, 128>}, {transform_indices = @transform_4, window_bounds = array<i64: 256, 128>}]} {
    %c0_i32 = arith.constant 0 : i32
    %0 = arith.cmpi eq, %arg2, %c0_i32 : i32
    %1 = arith.extui %0 : i1 to i32
    %c0_i32_0 = arith.constant 0 : i32
    %2 = arith.cmpi ne, %1, %c0_i32_0 : i32
    scf.if %2 {
      %cst_10 = arith.constant 0.000000e+00 : f32
      %12 = vector.broadcast %cst_10 : f32 to vector<256x128xf32>
      %c0_11 = arith.constant 0 : index
      %c0_12 = arith.constant 0 : index
      %13 = vector.load %arg8[%c0_11, %c0_12] : memref<256x128xf32, #tpu.memory_space<vmem>>, vector<256x128xf32>
      tpu.vector_store %arg8[%c0_11, %c0_12], %12 {strides = array<i32>} : memref<256x128xf32, #tpu.memory_space<vmem>>, vector<256x128xf32>,
    } else {
    }
    %c0 = arith.constant 0 : index
    %c0_1 = arith.constant 0 : index
    %3 = vector.load %arg8[%c0, %c0_1] : memref<256x128xf32, #tpu.memory_space<vmem>>, vector<256x128xf32>
    %c0_2 = arith.constant 0 : index
    %c0_3 = arith.constant 0 : index
    %4 = vector.load %arg3[%c0_2, %c0_3] : memref<256x8xf32, #tpu.memory_space<vmem>>, vector<256x8xf32>
    %c0_4 = arith.constant 0 : index
    %c0_5 = arith.constant 0 : index
    %5 = vector.load %arg4[%c0_4, %c0_5] : memref<8x128xf32, #tpu.memory_space<vmem>>, vector<8x128xf32>
    %cst = arith.constant dense<0.000000e+00> : vector<256x128xf32>
    %6 = tpu.matmul %4, %5, %cst {dimension_numbers = #tpu.dot_dimension_numbers<[1], [0], [0], [1], [0, 0, 1, 1], [], []>} : vector<256x8xf32>, vector<8x128xf32>, vector<256x128xf32> -> vector<256x128xf32>
    %7 = arith.addf %3, %6 : vector<256x128xf32>
    %c0_6 = arith.constant 0 : index
    %c0_7 = arith.constant 0 : index
    %8 = vector.load %arg8[%c0_6, %c0_7] : memref<256x128xf32, #tpu.memory_space<vmem>>, vector<256x128xf32>
    tpu.vector_store %arg8[%c0_6, %c0_7], %7 {strides = array<i32>} : memref<256x128xf32, #tpu.memory_space<vmem>>, vector<256x128xf32>,
    %c0_i32_8 = arith.constant 0 : i32
    %9 = arith.cmpi eq, %arg2, %c0_i32_8 : i32
    %10 = arith.extui %9 : i1 to i32
    %c0_i32_9 = arith.constant 0 : i32
    %11 = arith.cmpi ne, %10, %c0_i32_9 : i32
    scf.if %11 {
      %c0_10 = arith.constant 0 : index
      %c0_11 = arith.constant 0 : index
      %12 = vector.load %arg8[%c0_10, %c0_11] : memref<256x128xf32, #tpu.memory_space<vmem>>, vector<256x128xf32>
      %c0_12 = arith.constant 0 : index
      %c0_13 = arith.constant 0 : index
      %13 = vector.load %arg5[%c0_12, %c0_13] : memref<1x128xf32, #tpu.memory_space<vmem>>, vector<1x128xf32>
      %14 = vector.broadcast %13 : vector<1x128xf32> to vector<256x128xf32>
      %15 = arith.mulf %12, %14 : vector<256x128xf32>
      %c0_14 = arith.constant 0 : index
      %c0_15 = arith.constant 0 : index
      %16 = vector.load %arg6[%c0_14, %c0_15] : memref<1x128xf32, #tpu.memory_space<vmem>>, vector<1x128xf32>
      %17 = vector.broadcast %16 : vector<1x128xf32> to vector<256x128xf32>
      %18 = arith.addf %15, %17 : vector<256x128xf32>
      %cst_16 = arith.constant 0.000000e+00 : f32
      %19 = vector.broadcast %cst_16 : f32 to vector<256x128xf32>
      %20 = arith.subf %19, %18 : vector<256x128xf32>
      %21 = math.exp %20 : vector<256x128xf32>
      %cst_17 = arith.constant 1.000000e+00 : f32
      %22 = vector.broadcast %cst_17 : f32 to vector<256x128xf32>
      %23 = arith.addf %22, %21 : vector<256x128xf32>
      %cst_18 = arith.constant 1.000000e+00 : f32
      %24 = vector.broadcast %cst_18 : f32 to vector<256x128xf32>
      %25 = arith.divf %24, %23 : vector<256x128xf32>
      %26 = arith.mulf %18, %25 : vector<256x128xf32>
      %c0_19 = arith.constant 0 : index
      %c0_20 = arith.constant 0 : index
      %27 = vector.load %arg7[%c0_19, %c0_20] : memref<256x128xf32, #tpu.memory_space<vmem>>, vector<256x128xf32>
      tpu.vector_store %arg7[%c0_19, %c0_20], %26 {strides = array<i32>} : memref<256x128xf32, #tpu.memory_space<vmem>>, vector<256x128xf32>,
    } else {
    }
    return
  }
  func.func @transform_0(%arg0: i32, %arg1: i32, %arg2: i32) -> (i32, i32) {
    %c0_i32 = arith.constant 0 : i32
    return %arg0, %arg2 : i32, i32
  }
  func.func @transform_1(%arg0: i32, %arg1: i32, %arg2: i32) -> (i32, i32) {
    %c0_i32 = arith.constant 0 : i32
    return %arg2, %arg1 : i32, i32
  }
  func.func @transform_2(%arg0: i32, %arg1: i32, %arg2: i32) -> (i32, i32) {
    %c0_i32 = arith.constant 0 : i32
    %c0_i32_0 = arith.constant 0 : i32
    return %c0_i32, %arg1 : i32, i32
  }
  func.func @transform_3(%arg0: i32, %arg1: i32, %arg2: i32) -> (i32, i32) {
    %c0_i32 = arith.constant 0 : i32
    %c0_i32_0 = arith.constant 0 : i32
    return %c0_i32, %arg1 : i32, i32
  }
  func.func @transform_4(%arg0: i32, %arg1: i32, %arg2: i32) -> (i32, i32) {
    %c0_i32 = arith.constant 0 : i32
    return %arg0, %arg1 : i32, i32
  }
}

</mosaic_0001>

<llo_original>
// kernel: tpu_custom_call.1
$region0: #{tpu_custom_call.1}
  #allocation0 [shape = 'u32[]', space=smem, size = 0x4, offset = 0x4, fixed_abs, tag = 'smem constant byte address 0x4 - core index']
  #allocation1 [shape = 'u32[144,128]{1,0:T(1,128)}', space=vmem, size = 0x12000, scoped, tag = 'internal scratch']
  #allocation2 [shape = 'f32[256,128]{1,0:T(8,128)}', space=vmem, size = 0x20000, scoped, tag = 'scratch operand']
  %s0 = inlined_call_operand.vmem [shape: f32[512,8], index: 0, kind: input, shape index: {}]
  %s1 = inlined_call_operand.vmem [shape: f32[8,128], index: 1, kind: input, shape index: {}]
  %s2 = inlined_call_operand.vmem [shape: f32[1,128], index: 2, kind: input, shape index: {}]
  %s3 = inlined_call_operand.vmem [shape: f32[1,128], index: 3, kind: input, shape index: {}]
  %s4 = inlined_call_operand.hbm [shape: f32[512,128], index: 4, kind: output, shape index: {}]
  %s5 = sld [smem:[#allocation0]]
  $region57: #{tpu_custom_call.1} parent=0
    _
  %s7 = ssub.s32 1, %s5
  %s8 = scalar_select 0, %s7, %s5
  $region1: #{tpu_custom_call.1} parent=0
    #allocation3 [shape = 'u8[262144]{0}', space=vmem, size = 0x40000, scoped, tag = 'output window, operand 0']
    #allocation4 [shape = 's32[2]{0}', space=sflag, size = 0x8, scoped, tag = 'scoped memory for tpu_custom_call.1']
    %9 = vsyncpa [#allocation4], 0
    %s10 = scalar_lea.sflag [#allocation4], 1
    %11 = vsyncpa %s10, 0
    loop: start=0, step=1, limit=4
    $region2: #{tpu_custom_call.1} parent=1 // loop_pre_header
      _
    $region3: #{tpu_custom_call.1} parent=1 // loop_header
      %s13 = sphi 0, %s17
      %p14 = scmp.ge.s32.totalorder %s13, 4
      %s20 = sphi 0, %s39
      %s21 = sphi 0, %s35
      %s22 = sphi 0, %s31
      %s23 = sphi 0, %s20
      %s24 = sphi 0, %s21
      %s25 = sphi 0, %s22
      %s26 = sphi 0, %s23
      %s27 = sphi 0, %s24
      %s28 = sphi 0, %s25
      %s44 = sphi 0, %s46
      %s47 = sphi 0, %s44
      %s48 = sphi 0, %s47
      %s64 = sphi 0, %s48
      %s72 = sphi 0, %s74
      %s75 = sphi 0, %s72
      %s76 = sphi 0, %s75
      %s92 = sphi 0, %s76
      %s98 = sphi 0, %s100
      %s101 = sphi 0, %s98
      %s102 = sphi 0, %s101
      %s118 = sphi 0, %s102
      %s124 = sphi 0, %s126
      %s127 = sphi 0, %s124
      %s128 = sphi 0, %s127
      %s144 = sphi 0, %s128
      %s152 = sphi 0, %s154
      %s155 = sphi 0, %s152
      %s156 = sphi 0, %s155
      %s172 = sphi 0, %s156
    $region4: #{tpu_custom_call.1} parent=1 // loop_header_branch
      %16 = sbr.rel (%p14) target = $region8
    $region5: #{tpu_custom_call.1} parent=1 // loop_body
      %s18 = ssub.s32 %s13, 1
      %s19 = ssub.s32 %s13, 2
      %s29 = sadd.s32 1, %s22
      %p30 = scmp.ge.s32.totalorder %s29, 1
      %s31 = scalar_select %p30, 0, %s29
      %s32 = sadd.s32 1, %s21
      %s33 = scalar_select %p30, %s32, %s21
      %p34 = scmp.ge.s32.totalorder %s33, 1
      %s35 = scalar_select %p34, 0, %s33
      %s36 = sadd.s32 1, %s20
      %s37 = scalar_select %p34, %s36, %s20
      %p38 = scmp.ge.s32.totalorder %s37, 2
      %s39 = scalar_select %p38, 0, %s37
      %s40 = ssub.s32 %s20, %s39
      %s41 = ssub.s32 %s22, %s31
      %s42 = sor.u32 %s40, %s41
      %p43 = scmp.eq.s32.totalorder %s42, 0
      %s45 = sadd.s32 %s44, 1
      %s46 = scalar_select %p43, %s44, %s45
      %p49 = pneg %p43
      %p50 = scmp.eq.s32.totalorder %s13, 1
      %p51 = por %p49, %p50
      %p52 = scmp.ne.s32.totalorder %s44, %s47
      %p53 = scmp.eq.s32.totalorder %s13, 0
      %p54 = por %p52, %p53
      %p55 = scmp.ne.s32.totalorder %s44, %s47
      %p56 = scmp.eq.s32.totalorder %s18, 1
      %p57 = por %p55, %p56
      %p58 = scmp.ne.s32.totalorder %s47, %s48
      %p59 = scmp.eq.s32.totalorder %s18, 0
      %p60 = por %p58, %p59
      %p61 = scmp.ne.s32.totalorder %s47, %s48
      %p62 = scmp.eq.s32.totalorder %s19, 1
      %p63 = por %p61, %p62
      %p65 = scmp.ne.s32.totalorder %s48, %s64
      %p66 = scmp.eq.s32.totalorder %s19, 0
      %p67 = por %p65, %p66
      %s68 = ssub.s32 %s22, %s31
      %s69 = ssub.s32 %s21, %s35
      %s70 = sor.u32 %s68, %s69
      %p71 = scmp.eq.s32.totalorder %s70, 0
      %s73 = sadd.s32 %s72, 1
      %s74 = scalar_select %p71, %s72, %s73
      %p77 = pneg %p71
      %p78 = scmp.eq.s32.totalorder %s13, 1
      %p79 = por %p77, %p78
      %p80 = scmp.ne.s32.totalorder %s72, %s75
      %p81 = scmp.eq.s32.totalorder %s13, 0
      %p82 = por %p80, %p81
      %p83 = scmp.ne.s32.totalorder %s72, %s75
      %p84 = scmp.eq.s32.totalorder %s18, 1
      %p85 = por %p83, %p84
      %p86 = scmp.ne.s32.totalorder %s75, %s76
      %p87 = scmp.eq.s32.totalorder %s18, 0
      %p88 = por %p86, %p87
      %p89 = scmp.ne.s32.totalorder %s75, %s76
      %p90 = scmp.eq.s32.totalorder %s19, 1
      %p91 = por %p89, %p90
      %p93 = scmp.ne.s32.totalorder %s76, %s92
      %p94 = scmp.eq.s32.totalorder %s19, 0
      %p95 = por %p93, %p94
      %s96 = ssub.s32 %s21, %s35
      %p97 = scmp.eq.s32.totalorder %s96, 0
      %s99 = sadd.s32 %s98, 1
      %s100 = scalar_select %p97, %s98, %s99
      %p103 = pneg %p97
      %p104 = scmp.eq.s32.totalorder %s13, 1
      %p105 = por %p103, %p104
      %p106 = scmp.ne.s32.totalorder %s98, %s101
      %p107 = scmp.eq.s32.totalorder %s13, 0
      %p108 = por %p106, %p107
      %p109 = scmp.ne.s32.totalorder %s98, %s101
      %p110 = scmp.eq.s32.totalorder %s18, 1
      %p111 = por %p109, %p110
      %p112 = scmp.ne.s32.totalorder %s101, %s102
      %p113 = scmp.eq.s32.totalorder %s18, 0
      %p114 = por %p112, %p113
      %p115 = scmp.ne.s32.totalorder %s101, %s102
      %p116 = scmp.eq.s32.totalorder %s19, 1
      %p117 = por %p115, %p116
      %p119 = scmp.ne.s32.totalorder %s102, %s118
      %p120 = scmp.eq.s32.totalorder %s19, 0
      %p121 = por %p119, %p120
      %s122 = ssub.s32 %s21, %s35
      %p123 = scmp.eq.s32.totalorder %s122, 0
      %s125 = sadd.s32 %s124, 1
      %s126 = scalar_select %p123, %s124, %s125
      %p129 = pneg %p123
      %p130 = scmp.eq.s32.totalorder %s13, 1
      %p131 = por %p129, %p130
      %p132 = scmp.ne.s32.totalorder %s124, %s127
      %p133 = scmp.eq.s32.totalorder %s13, 0
      %p134 = por %p132, %p133
      %p135 = scmp.ne.s32.totalorder %s124, %s127
      %p136 = scmp.eq.s32.totalorder %s18, 1
      %p137 = por %p135, %p136
      %p138 = scmp.ne.s32.totalorder %s127, %s128
      %p139 = scmp.eq.s32.totalorder %s18, 0
      %p140 = por %p138, %p139
      %p141 = scmp.ne.s32.totalorder %s127, %s128
      %p142 = scmp.eq.s32.totalorder %s19, 1
      %p143 = por %p141, %p142
      %p145 = scmp.ne.s32.totalorder %s128, %s144
      %p146 = scmp.eq.s32.totalorder %s19, 0
      %p147 = por %p145, %p146
      %s148 = ssub.s32 %s20, %s39
      %s149 = ssub.s32 %s21, %s35
      %s150 = sor.u32 %s148, %s149
      %p151 = scmp.eq.s32.totalorder %s150, 0
      %s153 = sadd.s32 %s152, 1
      %s154 = scalar_select %p151, %s152, %s153
      %p157 = pneg %p151
      %p158 = scmp.eq.s32.totalorder %s13, 1
      %p159 = por %p157, %p158
      %p160 = scmp.ne.s32.totalorder %s152, %s155
      %p161 = scmp.eq.s32.totalorder %s13, 0
      %p162 = por %p160, %p161
      %p163 = scmp.ne.s32.totalorder %s152, %s155
      %p164 = scmp.eq.s32.totalorder %s18, 1
      %p165 = por %p163, %p164
      %p166 = scmp.ne.s32.totalorder %s155, %s156
      %p167 = scmp.eq.s32.totalorder %s18, 0
      %p168 = por %p166, %p167
      %p169 = scmp.ne.s32.totalorder %s155, %s156
      %p170 = scmp.eq.s32.totalorder %s19, 1
      %p171 = por %p169, %p170
      %p173 = scmp.ne.s32.totalorder %s156, %s172
      %p174 = scmp.eq.s32.totalorder %s19, 0
      %p175 = por %p173, %p174
      %p176 = scmp.le.s32.totalorder 1, %s13
      %p177 = scmp.lt.s32.totalorder %s13, 3
      %p178 = pnand %p176, %p177
      %p179 = pneg %p178
      // Predicated region
      $region9: #{tpu_custom_call.1} parent=5 // pred_check
        _
      $region10: #{tpu_custom_call.1} parent=5 // pred_check_branch
        %181 = sbr.rel (%p178) target = $region12
      $region11: #{tpu_custom_call.1} parent=5 // pred_region
        %s182 = ssub.s32 %s13, 1
        // Predicated region
        $region13: #{tpu_custom_call.1} parent=11 // pred_check
          %p183 = pneg %p88
        $region14: #{tpu_custom_call.1} parent=11 // pred_check_branch
          %185 = sbr.rel (%p183) target = $region16
        $region15: #{tpu_custom_call.1} parent=11 // pred_region
          %p186 = scmp.lt.s32.totalorder %s25, 0
          %s187 = scalar_select %p186, %s25, 0
          %p188 = scmp.lt.s32.totalorder %s24, 0
          %s189 = scalar_select %p188, %s24, 0
          %s190 = sadd.s32 %s189, %s187
          %s191 = smul.addr %s190, 8
          %s192 = scalar_lea.vmem %s1, %s191
        $region16: #{tpu_custom_call.1} parent=11 // pred_fallthru
          _
        // Predicated region
        $region17: #{tpu_custom_call.1} parent=11 // pred_check
          %p193 = pneg %p114
        $region18: #{tpu_custom_call.1} parent=11 // pred_check_branch
          %195 = sbr.rel (%p193) target = $region20
        $region19: #{tpu_custom_call.1} parent=11 // pred_region
          %p196 = scmp.lt.s32.totalorder %s24, 0
          %s197 = scalar_select %p196, %s24, 0
          %s198 = scalar_lea.vmem %s2, %s197
        $region20: #{tpu_custom_call.1} parent=11 // pred_fallthru
          _
        // Predicated region
        $region21: #{tpu_custom_call.1} parent=11 // pred_check
          %p199 = pneg %p140
        $region22: #{tpu_custom_call.1} parent=11 // pred_check_branch
          %201 = sbr.rel (%p199) target = $region24
        $region23: #{tpu_custom_call.1} parent=11 // pred_region
          %p202 = scmp.lt.s32.totalorder %s24, 0
          %s203 = scalar_select %p202, %s24, 0
          %s204 = scalar_lea.vmem %s3, %s203
        $region24: #{tpu_custom_call.1} parent=11 // pred_fallthru
          _
      $region12: #{tpu_custom_call.1} parent=5 // pred_fallthru
        _
      %p205 = scmp.lt.s32.totalorder %s13, 2
      // Predicated region
      $region25: #{tpu_custom_call.1} parent=5 // pred_check
        %p206 = pneg %p205
      $region26: #{tpu_custom_call.1} parent=5 // pred_check_branch
        %208 = sbr.rel (%p206) target = $region28
      $region27: #{tpu_custom_call.1} parent=5 // pred_region
        // Predicated region
        $region29: #{tpu_custom_call.1} parent=27 // pred_check
          %p209 = pneg %p54
        $region30: #{tpu_custom_call.1} parent=27 // pred_check_branch
          %211 = sbr.rel (%p209) target = $region32
        $region31: #{tpu_custom_call.1} parent=27 // pred_region
          %s212 = smul.u32 32, %s20
          %p213 = scmp.lt.s32.totalorder %s212, 63
          %s214 = scalar_select %p213, %s212, 63
          %p215 = scmp.lt.s32.totalorder %s22, 0
          %s216 = scalar_select %p215, %s22, 0
          %s217 = sadd.s32 %s216, %s214
          %s218 = smul.addr %s217, 8
          %s219 = scalar_lea.vmem %s0, %s218
          %s220 = smul.u32 32, %s20
        $region32: #{tpu_custom_call.1} parent=27 // pred_fallthru
          _
      $region28: #{tpu_custom_call.1} parent=5 // pred_fallthru
        _
      %p221 = scmp.le.s32.totalorder 1, %s13
      %p222 = scmp.lt.s32.totalorder %s13, 3
      %p223 = pnand %p221, %p222
      %p224 = pneg %p223
      // Predicated region
      $region33: #{tpu_custom_call.1} parent=5 // pred_check
        _
      $region34: #{tpu_custom_call.1} parent=5 // pred_check_branch
        %226 = sbr.rel (%p223) target = $region36
      $region35: #{tpu_custom_call.1} parent=5 // pred_region
        %s227 = ssub.s32 %s13, 1
        %s228 = smul.u32 32, %s23
        %p229 = scmp.lt.s32.totalorder %s228, 63
        %s230 = scalar_select %p229, %s228, 63
        %p231 = scmp.lt.s32.totalorder %s25, 0
        %s232 = scalar_select %p231, %s25, 0
        %s233 = sadd.s32 %s232, %s230
        %s234 = smul.addr %s233, 8
        %s235 = scalar_lea.vmem %s0, %s234
        %p236 = pneg %p60
        %p237 = pneg %p57
        %p238 = scmp.lt.s32.totalorder %s25, 0
        %s239 = scalar_select %p238, %s25, 0
        %p240 = scmp.lt.s32.totalorder %s24, 0
        %s241 = scalar_select %p240, %s24, 0
        %s242 = sadd.s32 %s241, %s239
        %s243 = smul.addr %s242, 8
        %s244 = scalar_lea.vmem %s1, %s243
        %p245 = pneg %p88
        %p246 = pneg %p85
        %p247 = scmp.lt.s32.totalorder %s24, 0
        %s248 = scalar_select %p247, %s24, 0
        %s249 = scalar_lea.vmem %s2, %s248
        %p250 = pneg %p114
        %p251 = pneg %p111
        %p252 = scmp.lt.s32.totalorder %s24, 0
        %s253 = scalar_select %p252, %s24, 0
        %s254 = scalar_lea.vmem %s3, %s253
        %p255 = pneg %p140
        %p256 = pneg %p137
        %p257 = pneg %p168
        %p258 = pneg %p165
        %s259 = sand.u32 %s155, 1
        %s260 = scalar_lea.sflag [#allocation4], %s259
        %s261 = sand.u32 %s155, 1
        %s262 = smul.addr %s261, 256
        %s263 = scalar_lea.vmem [#allocation3], %s262
        %s264 = smul.u32 32, %s23
        %p265 = scmp.lt.s32.totalorder %s264, 63
        %s266 = scalar_select %p265, %s264, 63
        %p267 = scmp.lt.s32.totalorder %s25, 0
        %s268 = scalar_select %p267, %s25, 0
        %s269 = sadd.s32 %s268, %s266
        %s270 = smul.addr %s269, 8
        %s271 = scalar_lea.vmem %s0, %s270
        %s272 = smul.u32 32, %s23
        %p273 = scmp.lt.s32.totalorder %s25, 0
        %s274 = scalar_select %p273, %s25, 0
        %p275 = scmp.lt.s32.totalorder %s24, 0
        %s276 = scalar_select %p275, %s24, 0
        %s277 = sadd.s32 %s276, %s274
        %s278 = smul.addr %s277, 8
        %s279 = scalar_lea.vmem %s1, %s278
        %p280 = scmp.lt.s32.totalorder %s24, 0
        %s281 = scalar_select %p280, %s24, 0
        %s282 = scalar_lea.vmem %s2, %s281
        %p283 = scmp.lt.s32.totalorder %s24, 0
        %s284 = scalar_select %p283, %s24, 0
        %s285 = scalar_lea.vmem %s3, %s284
        %s286 = smul.u32 32, %s23
        %p287 = scmp.eq.s32.totalorder %s25, 0
        // Predicated region
        $region37: #{tpu_custom_call.1} parent=35 // pred_check
          %p288 = pneg %p287
        $region38: #{tpu_custom_call.1} parent=35 // pred_check_branch
          %290 = sbr.rel (%p288) target = $region40
        $region39: #{tpu_custom_call.1} parent=35 // pred_region
          %291 = vst [vmem:[#allocation2] sm:$0xff] 0.0
          %292 = vst [vmem:[#allocation2 + $0x8] sm:$0xff] 0.0
          %293 = vst [vmem:[#allocation2 + $0x10] sm:$0xff] 0.0
          %294 = vst [vmem:[#allocation2 + $0x18] sm:$0xff] 0.0
          %295 = vst [vmem:[#allocation2 + $0x20] sm:$0xff] 0.0
          %296 = vst [vmem:[#allocation2 + $0x28] sm:$0xff] 0.0
          %297 = vst [vmem:[#allocation2 + $0x30] sm:$0xff] 0.0
          %298 = vst [vmem:[#allocation2 + $0x38] sm:$0xff] 0.0
          %299 = vst [vmem:[#allocation2 + $0x40] sm:$0xff] 0.0
          %300 = vst [vmem:[#allocation2 + $0x48] sm:$0xff] 0.0
          %301 = vst [vmem:[#allocation2 + $0x50] sm:$0xff] 0.0
          %302 = vst [vmem:[#allocation2 + $0x58] sm:$0xff] 0.0
          %303 = vst [vmem:[#allocation2 + $0x60] sm:$0xff] 0.0
          %304 = vst [vmem:[#allocation2 + $0x68] sm:$0xff] 0.0
          %305 = vst [vmem:[#allocation2 + $0x70] sm:$0xff] 0.0
          %306 = vst [vmem:[#allocation2 + $0x78] sm:$0xff] 0.0
          %307 = vst [vmem:[#allocation2 + $0x80] sm:$0xff] 0.0
          %308 = vst [vmem:[#allocation2 + $0x88] sm:$0xff] 0.0
          %309 = vst [vmem:[#allocation2 + $0x90] sm:$0xff] 0.0
          %310 = vst [vmem:[#allocation2 + $0x98] sm:$0xff] 0.0
          %311 = vst [vmem:[#allocation2 + $0xa0] sm:$0xff] 0.0
          %312 = vst [vmem:[#allocation2 + $0xa8] sm:$0xff] 0.0
          %313 = vst [vmem:[#allocation2 + $0xb0] sm:$0xff] 0.0
          %314 = vst [vmem:[#allocation2 + $0xb8] sm:$0xff] 0.0
          %315 = vst [vmem:[#allocation2 + $0xc0] sm:$0xff] 0.0
          %316 = vst [vmem:[#allocation2 + $0xc8] sm:$0xff] 0.0
          %317 = vst [vmem:[#allocation2 + $0xd0] sm:$0xff] 0.0
          %318 = vst [vmem:[#allocation2 + $0xd8] sm:$0xff] 0.0
          %319 = vst [vmem:[#allocation2 + $0xe0] sm:$0xff] 0.0
          %320 = vst [vmem:[#allocation2 + $0xe8] sm:$0xff] 0.0
          %321 = vst [vmem:[#allocation2 + $0xf0] sm:$0xff] 0.0
          %322 = vst [vmem:[#allocation2 + $0xf8] sm:$0xff] 0.0
        $region40: #{tpu_custom_call.1} parent=35 // pred_fallthru
          _
        %v323 = vld [vmem:[#allocation2] sm:$0xff]
        %v324 = vld [vmem:[#allocation2 + $0x8] sm:$0xff]
        %v325 = vld [vmem:[#allocation2 + $0x10] sm:$0xff]
        %v326 = vld [vmem:[#allocation2 + $0x18] sm:$0xff]
        %v327 = vld [vmem:[#allocation2 + $0x20] sm:$0xff]
        %v328 = vld [vmem:[#allocation2 + $0x28] sm:$0xff]
        %v329 = vld [vmem:[#allocation2 + $0x30] sm:$0xff]
        %v330 = vld [vmem:[#allocation2 + $0x38] sm:$0xff]
        %v331 = vld [vmem:[#allocation2 + $0x40] sm:$0xff]
        %v332 = vld [vmem:[#allocation2 + $0x48] sm:$0xff]
        %v333 = vld [vmem:[#allocation2 + $0x50] sm:$0xff]
        %v334 = vld [vmem:[#allocation2 + $0x58] sm:$0xff]
        %v335 = vld [vmem:[#allocation2 + $0x60] sm:$0xff]
        %v336 = vld [vmem:[#allocation2 + $0x68] sm:$0xff]
        %v337 = vld [vmem:[#allocation2 + $0x70] sm:$0xff]
        %v338 = vld [vmem:[#allocation2 + $0x78] sm:$0xff]
        %v339 = vld [vmem:[#allocation2 + $0x80] sm:$0xff]
        %v340 = vld [vmem:[#allocation2 + $0x88] sm:$0xff]
        %v341 = vld [vmem:[#allocation2 + $0x90] sm:$0xff]
        %v342 = vld [vmem:[#allocation2 + $0x98] sm:$0xff]
        %v343 = vld [vmem:[#allocation2 + $0xa0] sm:$0xff]
        %v344 = vld [vmem:[#allocation2 + $0xa8] sm:$0xff]
        %v345 = vld [vmem:[#allocation2 + $0xb0] sm:$0xff]
        %v346 = vld [vmem:[#allocation2 + $0xb8] sm:$0xff]
        %v347 = vld [vmem:[#allocation2 + $0xc0] sm:$0xff]
        %v348 = vld [vmem:[#allocation2 + $0xc8] sm:$0xff]
        %v349 = vld [vmem:[#allocation2 + $0xd0] sm:$0xff]
        %v350 = vld [vmem:[#allocation2 + $0xd8] sm:$0xff]
        %v351 = vld [vmem:[#allocation2 + $0xe0] sm:$0xff]
        %v352 = vld [vmem:[#allocation2 + $0xe8] sm:$0xff]
        %v353 = vld [vmem:[#allocation2 + $0xf0] sm:$0xff]
        %v354 = vld [vmem:[#allocation2 + $0xf8] sm:$0xff]
        %v355 = vld [vmem:[%s271] sm:$0xff]
        %v356 = vld [vmem:[%s271 + $0x8] sm:$0xff]
        %v357 = vld [vmem:[%s271 + $0x10] sm:$0xff]
        %v358 = vld [vmem:[%s271 + $0x18] sm:$0xff]
        %v359 = vld [vmem:[%s271 + $0x20] sm:$0xff]
        %v360 = vld [vmem:[%s271 + $0x28] sm:$0xff]
        %v361 = vld [vmem:[%s271 + $0x30] sm:$0xff]
        %v362 = vld [vmem:[%s271 + $0x38] sm:$0xff]
        %v363 = vld [vmem:[%s271 + $0x40] sm:$0xff]
        %v364 = vld [vmem:[%s271 + $0x48] sm:$0xff]
        %v365 = vld [vmem:[%s271 + $0x50] sm:$0xff]
        %v366 = vld [vmem:[%s271 + $0x58] sm:$0xff]
        %v367 = vld [vmem:[%s271 + $0x60] sm:$0xff]
        %v368 = vld [vmem:[%s271 + $0x68] sm:$0xff]
        %v369 = vld [vmem:[%s271 + $0x70] sm:$0xff]
        %v370 = vld [vmem:[%s271 + $0x78] sm:$0xff]
        %v371 = vld [vmem:[%s271 + $0x80] sm:$0xff]
        %v372 = vld [vmem:[%s271 + $0x88] sm:$0xff]
        %v373 = vld [vmem:[%s271 + $0x90] sm:$0xff]
        %v374 = vld [vmem:[%s271 + $0x98] sm:$0xff]
        %v375 = vld [vmem:[%s271 + $0xa0] sm:$0xff]
        %v376 = vld [vmem:[%s271 + $0xa8] sm:$0xff]
        %v377 = vld [vmem:[%s271 + $0xb0] sm:$0xff]
        %v378 = vld [vmem:[%s271 + $0xb8] sm:$0xff]
        %v379 = vld [vmem:[%s271 + $0xc0] sm:$0xff]
        %v380 = vld [vmem:[%s271 + $0xc8] sm:$0xff]
        %v381 = vld [vmem:[%s271 + $0xd0] sm:$0xff]
        %v382 = vld [vmem:[%s271 + $0xd8] sm:$0xff]
        %v383 = vld [vmem:[%s271 + $0xe0] sm:$0xff]
        %v384 = vld [vmem:[%s271 + $0xe8] sm:$0xff]
        %v385 = vld [vmem:[%s271 + $0xf0] sm:$0xff]
        %v386 = vld [vmem:[%s271 + $0xf8] sm:$0xff]
        %v387 = vld [vmem:[%s279] sm:$0xff]
        %vm388 = vcmask 64512
        %v390 = vsel %vm388, %v355, 0
        %v393 = vsel %vm388, %v356, 0
        %v396 = vsel %vm388, %v357, 0
        %v399 = vsel %vm388, %v358, 0
        %v402 = vsel %vm388, %v359, 0
        %v405 = vsel %vm388, %v360, 0
        %v408 = vsel %vm388, %v361, 0
        %v411 = vsel %vm388, %v362, 0
        %v414 = vsel %vm388, %v363, 0
        %v417 = vsel %vm388, %v364, 0
        %v420 = vsel %vm388, %v365, 0
        %v423 = vsel %vm388, %v366, 0
        %v426 = vsel %vm388, %v367, 0
        %v429 = vsel %vm388, %v368, 0
        %v432 = vsel %vm388, %v369, 0
        %v435 = vsel %vm388, %v370, 0
        %v438 = vsel %vm388, %v371, 0
        %v441 = vsel %vm388, %v372, 0
        %v444 = vsel %vm388, %v373, 0
        %v447 = vsel %vm388, %v374, 0
        %v450 = vsel %vm388, %v375, 0
        %v453 = vsel %vm388, %v376, 0
        %v456 = vsel %vm388, %v377, 0
        %v459 = vsel %vm388, %v378, 0
        %v462 = vsel %vm388, %v379, 0
        %v465 = vsel %vm388, %v380, 0
        %v468 = vsel %vm388, %v381, 0
        %v471 = vsel %vm388, %v382, 0
        %v474 = vsel %vm388, %v383, 0
        %v477 = vsel %vm388, %v384, 0
        %v480 = vsel %vm388, %v385, 0
        %v483 = vsel %vm388, %v386, 0
        %485 = vmatprep.subr.mxu0 0.0
        %486 = vmatpush1.msra.mxu0 %v387
        %487 = vmatprep.subr.mxu0 0.0
        %488 = vmatpush1.msra.mxu0 0.0
        %489 = vmatprep.subr.mxu0 0.0
        %490 = vmatpush1.msra.mxu0 0.0
        %491 = vmatprep.subr.mxu0 0.0
        %492 = vmatpush1.msra.mxu0 0.0
        %493 = vmatprep.subr.mxu0 0.0
        %494 = vmatpush1.msra.mxu0 0.0
        %495 = vmatprep.subr.mxu0 0.0
        %496 = vmatpush1.msra.mxu0 0.0
        %497 = vmatprep.subr.mxu0 0.0
        %498 = vmatpush1.msra.mxu0 0.0
        %499 = vmatprep.subr.mxu0 0.0
        %500 = vmatpush1.msra.mxu0 0.0
        %501 = vmatprep.subr.mxu0 0.0
        %502 = vmatpush1.msra.mxu0 0.0
        %503 = vmatprep.subr.mxu0 0.0
        %504 = vmatpush1.msra.mxu0 0.0
        %505 = vmatprep.subr.mxu0 0.0
        %506 = vmatpush1.msra.mxu0 0.0
        %507 = vmatprep.subr.mxu0 0.0
        %508 = vmatpush1.msra.mxu0 0.0
        %509 = vmatprep.subr.mxu0 0.0
        %510 = vmatpush1.msra.mxu0 0.0
        %511 = vmatprep.subr.mxu0 0.0
        %512 = vmatpush1.msra.mxu0 0.0
        %513 = vmatprep.subr.mxu0 0.0
        %514 = vmatpush1.msra.mxu0 0.0
        %515 = vmatprep.subr.mxu0 0.0
        %516 = vmatpush1.msra.mxu0 0.0
        %517 = vmatprep.subr.mxu0 0.0
        %518 = vmatpush1.msra.mxu0 0.0
        %519 = vmatprep.subr.mxu0 0.0
        %520 = vmatpush1.msra.mxu0 0.0
        %521 = vmatprep.subr.mxu0 0.0
        %522 = vmatpush1.msra.mxu0 0.0
        %523 = vmatprep.subr.mxu0 0.0
        %524 = vmatpush1.msra.mxu0 0.0
        %525 = vmatprep.subr.mxu0 0.0
        %526 = vmatpush1.msra.mxu0 0.0
        %527 = vmatprep.subr.mxu0 0.0
        %528 = vmatpush1.msra.mxu0 0.0
        %529 = vmatprep.subr.mxu0 0.0
        %530 = vmatpush1.msra.mxu0 0.0
        %531 = vmatprep.subr.mxu0 0.0
        %532 = vmatpush1.msra.mxu0 0.0
        %533 = vmatprep.subr.mxu0 0.0
        %534 = vmatpush1.msra.mxu0 0.0
        %535 = vmatprep.subr.mxu0 0.0
        %536 = vmatpush1.msra.mxu0 0.0
        %537 = vmatprep.subr.mxu0 0.0
        %538 = vmatpush1.msra.mxu0 0.0
        %539 = vmatprep.subr.mxu0 0.0
        %540 = vmatpush1.msra.mxu0 0.0
        %541 = vmatprep.subr.mxu0 0.0
        %542 = vmatpush1.msra.mxu0 0.0
        %543 = vmatprep.subr.mxu0 0.0
        %544 = vmatpush1.msra.mxu0 0.0
        %545 = vmatprep.subr.mxu0 0.0
        %546 = vmatpush1.msra.mxu0 0.0
        %547 = vmatprep.subr.mxu0 0.0
        %548 = vmatpush1.msra.mxu0 0.0
        %549 = vmatprep.mubr.f32.mxu0 0.0
        %550 = vmatmul.mubr.f32.gmra.mrb[0].mxu0 %v390
        %v551 = vpop.f32.mrb[0].mxu0
        %v552 = vadd.f32 0.0, %v551
        %v553 = vpop.f32.mrb[0].mxu0
        %554 = vmatprep.mubr.f32.mxu0 0.0
        %555 = vmatmul.mubr.f32.gmra.mrb[0].mxu0 %v393
        %v556 = vpop.f32.mrb[0].mxu0
        %v557 = vadd.f32 0.0, %v556
        %v558 = vpop.f32.mrb[0].mxu0
        %559 = vmatprep.mubr.f32.mxu0 0.0
        %560 = vmatmul.mubr.f32.gmra.mrb[0].mxu0 %v396
        %v561 = vpop.f32.mrb[0].mxu0
        %v562 = vadd.f32 0.0, %v561
        %v563 = vpop.f32.mrb[0].mxu0
        %564 = vmatprep.mubr.f32.mxu0 0.0
        %565 = vmatmul.mubr.f32.gmra.mrb[0].mxu0 %v399
        %v566 = vpop.f32.mrb[0].mxu0
        %v567 = vadd.f32 0.0, %v566
        %v568 = vpop.f32.mrb[0].mxu0
        %569 = vmatprep.mubr.f32.mxu0 0.0
        %570 = vmatmul.mubr.f32.gmra.mrb[0].mxu0 %v402
        %v571 = vpop.f32.mrb[0].mxu0
        %v572 = vadd.f32 0.0, %v571
        %v573 = vpop.f32.mrb[0].mxu0
        %574 = vmatprep.mubr.f32.mxu0 0.0
        %575 = vmatmul.mubr.f32.gmra.mrb[0].mxu0 %v405
        %v576 = vpop.f32.mrb[0].mxu0
        %v577 = vadd.f32 0.0, %v576
        %v578 = vpop.f32.mrb[0].mxu0
        %579 = vmatprep.mubr.f32.mxu0 0.0
        %580 = vmatmul.mubr.f32.gmra.mrb[0].mxu0 %v408
        %v581 = vpop.f32.mrb[0].mxu0
        %v582 = vadd.f32 0.0, %v581
        %v583 = vpop.f32.mrb[0].mxu0
        %584 = vmatprep.mubr.f32.mxu0 0.0
        %585 = vmatmul.mubr.f32.gmra.mrb[0].mxu0 %v411
        %v586 = vpop.f32.mrb[0].mxu0
        %v587 = vadd.f32 0.0, %v586
        %v588 = vpop.f32.mrb[0].mxu0
        %589 = vmatprep.mubr.f32.mxu0 0.0
        %590 = vmatmul.mubr.f32.gmra.mrb[0].mxu0 %v414
        %v591 = vpop.f32.mrb[0].mxu0
        %v592 = vadd.f32 0.0, %v591
        %v593 = vpop.f32.mrb[0].mxu0
        %594 = vmatprep.mubr.f32.mxu0 0.0
        %595 = vmatmul.mubr.f32.gmra.mrb[0].mxu0 %v417
        %v596 = vpop.f32.mrb[0].mxu0
        %v597 = vadd.f32 0.0, %v596
        %v598 = vpop.f32.mrb[0].mxu0
        %599 = vmatprep.mubr.f32.mxu0 0.0
        %600 = vmatmul.mubr.f32.gmra.mrb[0].mxu0 %v420
        %v601 = vpop.f32.mrb[0].mxu0
        %v602 = vadd.f32 0.0, %v601
        %v603 = vpop.f32.mrb[0].mxu0
        %604 = vmatprep.mubr.f32.mxu0 0.0
        %605 = vmatmul.mubr.f32.gmra.mrb[0].mxu0 %v423
        %v606 = vpop.f32.mrb[0].mxu0
        %v607 = vadd.f32 0.0, %v606
        %v608 = vpop.f32.mrb[0].mxu0
        %609 = vmatprep.mubr.f32.mxu0 0.0
        %610 = vmatmul.mubr.f32.gmra.mrb[0].mxu0 %v426
        %v611 = vpop.f32.mrb[0].mxu0
        %v612 = vadd.f32 0.0, %v611
        %v613 = vpop.f32.mrb[0].mxu0
        %614 = vmatprep.mubr.f32.mxu0 0.0
        %615 = vmatmul.mubr.f32.gmra.mrb[0].mxu0 %v429
        %v616 = vpop.f32.mrb[0].mxu0
        %v617 = vadd.f32 0.0, %v616
        %v618 = vpop.f32.mrb[0].mxu0
        %619 = vmatprep.mubr.f32.mxu0 0.0
        %620 = vmatmul.mubr.f32.gmra.mrb[0].mxu0 %v432
        %v621 = vpop.f32.mrb[0].mxu0
        %v622 = vadd.f32 0.0, %v621
        %v623 = vpop.f32.mrb[0].mxu0
        %624 = vmatprep.mubr.f32.mxu0 0.0
        %625 = vmatmul.mubr.f32.gmra.mrb[0].mxu0 %v435
        %v626 = vpop.f32.mrb[0].mxu0
        %v627 = vadd.f32 0.0, %v626
        %v628 = vpop.f32.mrb[0].mxu0
        %629 = vmatprep.mubr.f32.mxu0 0.0
        %630 = vmatmul.mubr.f32.gmra.mrb[0].mxu0 %v438
        %v631 = vpop.f32.mrb[0].mxu0
        %v632 = vadd.f32 0.0, %v631
        %v633 = vpop.f32.mrb[0].mxu0
        %634 = vmatprep.mubr.f32.mxu0 0.0
        %635 = vmatmul.mubr.f32.gmra.mrb[0].mxu0 %v441
        %v636 = vpop.f32.mrb[0].mxu0
        %v637 = vadd.f32 0.0, %v636
        %v638 = vpop.f32.mrb[0].mxu0
        %639 = vmatprep.mubr.f32.mxu0 0.0
        %640 = vmatmul.mubr.f32.gmra.mrb[0].mxu0 %v444
        %v641 = vpop.f32.mrb[0].mxu0
        %v642 = vadd.f32 0.0, %v641
        %v643 = vpop.f32.mrb[0].mxu0
        %644 = vmatprep.mubr.f32.mxu0 0.0
        %645 = vmatmul.mubr.f32.gmra.mrb[0].mxu0 %v447
        %v646 = vpop.f32.mrb[0].mxu0
        %v647 = vadd.f32 0.0, %v646
        %v648 = vpop.f32.mrb[0].mxu0
        %649 = vmatprep.mubr.f32.mxu0 0.0
        %650 = vmatmul.mubr.f32.gmra.mrb[0].mxu0 %v450
        %v651 = vpop.f32.mrb[0].mxu0
        %v652 = vadd.f32 0.0, %v651
        %v653 = vpop.f32.mrb[0].mxu0
        %654 = vmatprep.mubr.f32.mxu0 0.0
        %655 = vmatmul.mubr.f32.gmra.mrb[0].mxu0 %v453
        %v656 = vpop.f32.mrb[0].mxu0
        %v657 = vadd.f32 0.0, %v656
        %v658 = vpop.f32.mrb[0].mxu0
        %659 = vmatprep.mubr.f32.mxu0 0.0
        %660 = vmatmul.mubr.f32.gmra.mrb[0].mxu0 %v456
        %v661 = vpop.f32.mrb[0].mxu0
        %v662 = vadd.f32 0.0, %v661
        %v663 = vpop.f32.mrb[0].mxu0
        %664 = vmatprep.mubr.f32.mxu0 0.0
        %665 = vmatmul.mubr.f32.gmra.mrb[0].mxu0 %v459
        %v666 = vpop.f32.mrb[0].mxu0
        %v667 = vadd.f32 0.0, %v666
        %v668 = vpop.f32.mrb[0].mxu0
        %669 = vmatprep.mubr.f32.mxu0 0.0
        %670 = vmatmul.mubr.f32.gmra.mrb[0].mxu0 %v462
        %v671 = vpop.f32.mrb[0].mxu0
        %v672 = vadd.f32 0.0, %v671
        %v673 = vpop.f32.mrb[0].mxu0
        %674 = vmatprep.mubr.f32.mxu0 0.0
        %675 = vmatmul.mubr.f32.gmra.mrb[0].mxu0 %v465
        %v676 = vpop.f32.mrb[0].mxu0
        %v677 = vadd.f32 0.0, %v676
        %v678 = vpop.f32.mrb[0].mxu0
        %679 = vmatprep.mubr.f32.mxu0 0.0
        %680 = vmatmul.mubr.f32.gmra.mrb[0].mxu0 %v468
        %v681 = vpop.f32.mrb[0].mxu0
        %v682 = vadd.f32 0.0, %v681
        %v683 = vpop.f32.mrb[0].mxu0
        %684 = vmatprep.mubr.f32.mxu0 0.0
        %685 = vmatmul.mubr.f32.gmra.mrb[0].mxu0 %v471
        %v686 = vpop.f32.mrb[0].mxu0
        %v687 = vadd.f32 0.0, %v686
        %v688 = vpop.f32.mrb[0].mxu0
        %689 = vmatprep.mubr.f32.mxu0 0.0
        %690 = vmatmul.mubr.f32.gmra.mrb[0].mxu0 %v474
        %v691 = vpop.f32.mrb[0].mxu0
        %v692 = vadd.f32 0.0, %v691
        %v693 = vpop.f32.mrb[0].mxu0
        %694 = vmatprep.mubr.f32.mxu0 0.0
        %695 = vmatmul.mubr.f32.gmra.mrb[0].mxu0 %v477
        %v696 = vpop.f32.mrb[0].mxu0
        %v697 = vadd.f32 0.0, %v696
        %v698 = vpop.f32.mrb[0].mxu0
        %699 = vmatprep.mubr.f32.mxu0 0.0
        %700 = vmatmul.mubr.f32.gmra.mrb[0].mxu0 %v480
        %v701 = vpop.f32.mrb[0].mxu0
        %v702 = vadd.f32 0.0, %v701
        %v703 = vpop.f32.mrb[0].mxu0
        %704 = vmatprep.mubr.f32.mxu0 0.0
        %705 = vmatmul.mubr.f32.gmra.mrb[0].mxu0 %v483
        %v706 = vpop.f32.mrb[0].mxu0
        %v707 = vadd.f32 0.0, %v706
        %v708 = vpop.f32.mrb[0].mxu0
        %709 = vdwg.mxu0
        %v710 = vadd.f32 %v323, %v552
        %v711 = vadd.f32 %v324, %v557
        %v712 = vadd.f32 %v325, %v562
        %v713 = vadd.f32 %v326, %v567
        %v714 = vadd.f32 %v327, %v572
        %v715 = vadd.f32 %v328, %v577
        %v716 = vadd.f32 %v329, %v582
        %v717 = vadd.f32 %v330, %v587
        %v718 = vadd.f32 %v331, %v592
        %v719 = vadd.f32 %v332, %v597
        %v720 = vadd.f32 %v333, %v602
        %v721 = vadd.f32 %v334, %v607
        %v722 = vadd.f32 %v335, %v612
        %v723 = vadd.f32 %v336, %v617
        %v724 = vadd.f32 %v337, %v622
        %v725 = vadd.f32 %v338, %v627
        %v726 = vadd.f32 %v339, %v632
        %v727 = vadd.f32 %v340, %v637
        %v728 = vadd.f32 %v341, %v642
        %v729 = vadd.f32 %v342, %v647
        %v730 = vadd.f32 %v343, %v652
        %v731 = vadd.f32 %v344, %v657
        %v732 = vadd.f32 %v345, %v662
        %v733 = vadd.f32 %v346, %v667
        %v734 = vadd.f32 %v347, %v672
        %v735 = vadd.f32 %v348, %v677
        %v736 = vadd.f32 %v349, %v682
        %v737 = vadd.f32 %v350, %v687
        %v738 = vadd.f32 %v351, %v692
        %v739 = vadd.f32 %v352, %v697
        %v740 = vadd.f32 %v353, %v702
        %v741 = vadd.f32 %v354, %v707
        %742 = vst [vmem:[#allocation2] sm:$0xff] %v710
        %743 = vst [vmem:[#allocation2 + $0x8] sm:$0xff] %v711
        %744 = vst [vmem:[#allocation2 + $0x10] sm:$0xff] %v712
        %745 = vst [vmem:[#allocation2 + $0x18] sm:$0xff] %v713
        %746 = vst [vmem:[#allocation2 + $0x20] sm:$0xff] %v714
        %747 = vst [vmem:[#allocation2 + $0x28] sm:$0xff] %v715
        %748 = vst [vmem:[#allocation2 + $0x30] sm:$0xff] %v716
        %749 = vst [vmem:[#allocation2 + $0x38] sm:$0xff] %v717
        %750 = vst [vmem:[#allocation2 + $0x40] sm:$0xff] %v718
        %751 = vst [vmem:[#allocation2 + $0x48] sm:$0xff] %v719
        %752 = vst [vmem:[#allocation2 + $0x50] sm:$0xff] %v720
        %753 = vst [vmem:[#allocation2 + $0x58] sm:$0xff] %v721
        %754 = vst [vmem:[#allocation2 + $0x60] sm:$0xff] %v722
        %755 = vst [vmem:[#allocation2 + $0x68] sm:$0xff] %v723
        %756 = vst [vmem:[#allocation2 + $0x70] sm:$0xff] %v724
        %757 = vst [vmem:[#allocation2 + $0x78] sm:$0xff] %v725
        %758 = vst [vmem:[#allocation2 + $0x80] sm:$0xff] %v726
        %759 = vst [vmem:[#allocation2 + $0x88] sm:$0xff] %v727
        %760 = vst [vmem:[#allocation2 + $0x90] sm:$0xff] %v728
        %761 = vst [vmem:[#allocation2 + $0x98] sm:$0xff] %v729
        %762 = vst [vmem:[#allocation2 + $0xa0] sm:$0xff] %v730
        %763 = vst [vmem:[#allocation2 + $0xa8] sm:$0xff] %v731
        %764 = vst [vmem:[#allocation2 + $0xb0] sm:$0xff] %v732
        %765 = vst [vmem:[#allocation2 + $0xb8] sm:$0xff] %v733
        %766 = vst [vmem:[#allocation2 + $0xc0] sm:$0xff] %v734
        %767 = vst [vmem:[#allocation2 + $0xc8] sm:$0xff] %v735
        %768 = vst [vmem:[#allocation2 + $0xd0] sm:$0xff] %v736
        %769 = vst [vmem:[#allocation2 + $0xd8] sm:$0xff] %v737
        %770 = vst [vmem:[#allocation2 + $0xe0] sm:$0xff] %v738
        %771 = vst [vmem:[#allocation2 + $0xe8] sm:$0xff] %v739
        %772 = vst [vmem:[#allocation2 + $0xf0] sm:$0xff] %v740
        %773 = vst [vmem:[#allocation2 + $0xf8] sm:$0xff] %v741
        // Predicated region
        $region41: #{tpu_custom_call.1} parent=35 // pred_check
          %p774 = pneg %p287
        $region42: #{tpu_custom_call.1} parent=35 // pred_check_branch
          %776 = sbr.rel (%p774) target = $region44
        $region43: #{tpu_custom_call.1} parent=35 // pred_region
          %v777 = vld [vmem:[#allocation2] sm:$0xff]
          %v778 = vld [vmem:[#allocation2 + $0x8] sm:$0xff]
          %v779 = vld [vmem:[#allocation2 + $0x10] sm:$0xff]
          %v780 = vld [vmem:[#allocation2 + $0x18] sm:$0xff]
          %v781 = vld [vmem:[#allocation2 + $0x20] sm:$0xff]
          %v782 = vld [vmem:[#allocation2 + $0x28] sm:$0xff]
          %v783 = vld [vmem:[#allocation2 + $0x30] sm:$0xff]
          %v784 = vld [vmem:[#allocation2 + $0x38] sm:$0xff]
          %v785 = vld [vmem:[#allocation2 + $0x40] sm:$0xff]
          %v786 = vld [vmem:[#allocation2 + $0x48] sm:$0xff]
          %v787 = vld [vmem:[#allocation2 + $0x50] sm:$0xff]
          %v788 = vld [vmem:[#allocation2 + $0x58] sm:$0xff]
          %v789 = vld [vmem:[#allocation2 + $0x60] sm:$0xff]
          %v790 = vld [vmem:[#allocation2 + $0x68] sm:$0xff]
          %v791 = vld [vmem:[#allocation2 + $0x70] sm:$0xff]
          %v792 = vld [vmem:[#allocation2 + $0x78] sm:$0xff]
          %v793 = vld [vmem:[#allocation2 + $0x80] sm:$0xff]
          %v794 = vld [vmem:[#allocation2 + $0x88] sm:$0xff]
          %v795 = vld [vmem:[#allocation2 + $0x90] sm:$0xff]
          %v796 = vld [vmem:[#allocation2 + $0x98] sm:$0xff]
          %v797 = vld [vmem:[#allocation2 + $0xa0] sm:$0xff]
          %v798 = vld [vmem:[#allocation2 + $0xa8] sm:$0xff]
          %v799 = vld [vmem:[#allocation2 + $0xb0] sm:$0xff]
          %v800 = vld [vmem:[#allocation2 + $0xb8] sm:$0xff]
          %v801 = vld [vmem:[#allocation2 + $0xc0] sm:$0xff]
          %v802 = vld [vmem:[#allocation2 + $0xc8] sm:$0xff]
          %v803 = vld [vmem:[#allocation2 + $0xd0] sm:$0xff]
          %v804 = vld [vmem:[#allocation2 + $0xd8] sm:$0xff]
          %v805 = vld [vmem:[#allocation2 + $0xe0] sm:$0xff]
          %v806 = vld [vmem:[#allocation2 + $0xe8] sm:$0xff]
          %v807 = vld [vmem:[#allocation2 + $0xf0] sm:$0xff]
          %v808 = vld [vmem:[#allocation2 + $0xf8] sm:$0xff]
          %v809 = vld [vmem:[%s282] sm:$0x1]
          %v811 = vlaneseq
          %v812 = vshrl.u32 %v811, 7
          %v813 = vsub.s32 0, %v812
          %v814 = vrot.slane %v809, %v813
          %v816 = vmul.f32 %v777, %v814
          %v817 = vmul.f32 %v778, %v814
          %v818 = vmul.f32 %v779, %v814
          %v819 = vmul.f32 %v780, %v814
          %v820 = vmul.f32 %v781, %v814
          %v821 = vmul.f32 %v782, %v814
          %v822 = vmul.f32 %v783, %v814
          %v823 = vmul.f32 %v784, %v814
          %v824 = vmul.f32 %v785, %v814
          %v825 = vmul.f32 %v786, %v814
          %v826 = vmul.f32 %v787, %v814
          %v827 = vmul.f32 %v788, %v814
          %v828 = vmul.f32 %v789, %v814
          %v829 = vmul.f32 %v790, %v814
          %v830 = vmul.f32 %v791, %v814
          %v831 = vmul.f32 %v792, %v814
          %v832 = vmul.f32 %v793, %v814
          %v833 = vmul.f32 %v794, %v814
          %v834 = vmul.f32 %v795, %v814
          %v835 = vmul.f32 %v796, %v814
          %v836 = vmul.f32 %v797, %v814
          %v837 = vmul.f32 %v798, %v814
          %v838 = vmul.f32 %v799, %v814
          %v839 = vmul.f32 %v800, %v814
          %v840 = vmul.f32 %v801, %v814
          %v841 = vmul.f32 %v802, %v814
          %v842 = vmul.f32 %v803, %v814
          %v843 = vmul.f32 %v804, %v814
          %v844 = vmul.f32 %v805, %v814
          %v845 = vmul.f32 %v806, %v814
          %v846 = vmul.f32 %v807, %v814
          %v847 = vmul.f32 %v808, %v814
          %v848 = vld [vmem:[%s285] sm:$0x1]
          %v850 = vlaneseq
          %v851 = vshrl.u32 %v850, 7
          %v852 = vsub.s32 0, %v851
          %v853 = vrot.slane %v848, %v852
          %v855 = vadd.f32 %v816, %v853
          %v856 = vadd.f32 %v817, %v853
          %v857 = vadd.f32 %v818, %v853
          %v858 = vadd.f32 %v819, %v853
          %v859 = vadd.f32 %v820, %v853
          %v860 = vadd.f32 %v821, %v853
          %v861 = vadd.f32 %v822, %v853
          %v862 = vadd.f32 %v823, %v853
          %v863 = vadd.f32 %v824, %v853
          %v864 = vadd.f32 %v825, %v853
          %v865 = vadd.f32 %v826, %v853
          %v866 = vadd.f32 %v827, %v853
          %v867 = vadd.f32 %v828, %v853
          %v868 = vadd.f32 %v829, %v853
          %v869 = vadd.f32 %v830, %v853
          %v870 = vadd.f32 %v831, %v853
          %v871 = vadd.f32 %v832, %v853
          %v872 = vadd.f32 %v833, %v853
          %v873 = vadd.f32 %v834, %v853
          %v874 = vadd.f32 %v835, %v853
          %v875 = vadd.f32 %v836, %v853
          %v876 = vadd.f32 %v837, %v853
          %v877 = vadd.f32 %v838, %v853
          %v878 = vadd.f32 %v839, %v853
          %v879 = vadd.f32 %v840, %v853
          %v880 = vadd.f32 %v841, %v853
          %v881 = vadd.f32 %v842, %v853
          %v882 = vadd.f32 %v843, %v853
          %v883 = vadd.f32 %v844, %v853
          %v884 = vadd.f32 %v845, %v853
          %v885 = vadd.f32 %v846, %v853
          %v886 = vadd.f32 %v847, %v853
          %v887 = vsub.f32 0.0, %v855
          %v888 = vsub.f32 0.0, %v856
          %v889 = vsub.f32 0.0, %v857
          %v890 = vsub.f32 0.0, %v858
          %v891 = vsub.f32 0.0, %v859
          %v892 = vsub.f32 0.0, %v860
          %v893 = vsub.f32 0.0, %v861
          %v894 = vsub.f32 0.0, %v862
          %v895 = vsub.f32 0.0, %v863
          %v896 = vsub.f32 0.0, %v864
          %v897 = vsub.f32 0.0, %v865
          %v898 = vsub.f32 0.0, %v866
          %v899 = vsub.f32 0.0, %v867
          %v900 = vsub.f32 0.0, %v868
          %v901 = vsub.f32 0.0, %v869
          %v902 = vsub.f32 0.0, %v870
          %v903 = vsub.f32 0.0, %v871
          %v904 = vsub.f32 0.0, %v872
          %v905 = vsub.f32 0.0, %v873
          %v906 = vsub.f32 0.0, %v874
          %v907 = vsub.f32 0.0, %v875
          %v908 = vsub.f32 0.0, %v876
          %v909 = vsub.f32 0.0, %v877
          %v910 = vsub.f32 0.0, %v878
          %v911 = vsub.f32 0.0, %v879
          %v912 = vsub.f32 0.0, %v880
          %v913 = vsub.f32 0.0, %v881
          %v914 = vsub.f32 0.0, %v882
          %v915 = vsub.f32 0.0, %v883
          %v916 = vsub.f32 0.0, %v884
          %v917 = vsub.f32 0.0, %v885
          %v918 = vsub.f32 0.0, %v886
          %v919 = vmul.f32 %v887, 1.442695
          %v920 = vpow.pop %v919
          %v921 = vmul.f32 %v888, 1.442695
          %v922 = vpow.pop %v921
          %v923 = vmul.f32 %v889, 1.442695
          %v924 = vpow.pop %v923
          %v925 = vmul.f32 %v890, 1.442695
          %v926 = vpow.pop %v925
          %v927 = vmul.f32 %v891, 1.442695
          %v928 = vpow.pop %v927
          %v929 = vmul.f32 %v892, 1.442695
          %v930 = vpow.pop %v929
          %v931 = vmul.f32 %v893, 1.442695
          %v932 = vpow.pop %v931
          %v933 = vmul.f32 %v894, 1.442695
          %v934 = vpow.pop %v933
          %v935 = vmul.f32 %v895, 1.442695
          %v936 = vpow.pop %v935
          %v937 = vmul.f32 %v896, 1.442695
          %v938 = vpow.pop %v937
          %v939 = vmul.f32 %v897, 1.442695
          %v940 = vpow.pop %v939
          %v941 = vmul.f32 %v898, 1.442695
          %v942 = vpow.pop %v941
          %v943 = vmul.f32 %v899, 1.442695
          %v944 = vpow.pop %v943
          %v945 = vmul.f32 %v900, 1.442695
          %v946 = vpow.pop %v945
          %v947 = vmul.f32 %v901, 1.442695
          %v948 = vpow.pop %v947
          %v949 = vmul.f32 %v902, 1.442695
          %v950 = vpow.pop %v949
          %v951 = vmul.f32 %v903, 1.442695
          %v952 = vpow.pop %v951
          %v953 = vmul.f32 %v904, 1.442695
          %v954 = vpow.pop %v953
          %v955 = vmul.f32 %v905, 1.442695
          %v956 = vpow.pop %v955
          %v957 = vmul.f32 %v906, 1.442695
          %v958 = vpow.pop %v957
          %v959 = vmul.f32 %v907, 1.442695
          %v960 = vpow.pop %v959
          %v961 = vmul.f32 %v908, 1.442695
          %v962 = vpow.pop %v961
          %v963 = vmul.f32 %v909, 1.442695
          %v964 = vpow.pop %v963
          %v965 = vmul.f32 %v910, 1.442695
          %v966 = vpow.pop %v965
          %v967 = vmul.f32 %v911, 1.442695
          %v968 = vpow.pop %v967
          %v969 = vmul.f32 %v912, 1.442695
          %v970 = vpow.pop %v969
          %v971 = vmul.f32 %v913, 1.442695
          %v972 = vpow.pop %v971
          %v973 = vmul.f32 %v914, 1.442695
          %v974 = vpow.pop %v973
          %v975 = vmul.f32 %v915, 1.442695
          %v976 = vpow.pop %v975
          %v977 = vmul.f32 %v916, 1.442695
          %v978 = vpow.pop %v977
          %v979 = vmul.f32 %v917, 1.442695
          %v980 = vpow.pop %v979
          %v981 = vmul.f32 %v918, 1.442695
          %v982 = vpow.pop %v981
          %v983 = vadd.f32 %v920, 1.0
          %v984 = vadd.f32 %v922, 1.0
          %v985 = vadd.f32 %v924, 1.0
          %v986 = vadd.f32 %v926, 1.0
          %v987 = vadd.f32 %v928, 1.0
          %v988 = vadd.f32 %v930, 1.0
          %v989 = vadd.f32 %v932, 1.0
          %v990 = vadd.f32 %v934, 1.0
          %v991 = vadd.f32 %v936, 1.0
          %v992 = vadd.f32 %v938, 1.0
          %v993 = vadd.f32 %v940, 1.0
          %v994 = vadd.f32 %v942, 1.0
          %v995 = vadd.f32 %v944, 1.0
          %v996 = vadd.f32 %v946, 1.0
          %v997 = vadd.f32 %v948, 1.0
          %v998 = vadd.f32 %v950, 1.0
          %v999 = vadd.f32 %v952, 1.0
          %v1000 = vadd.f32 %v954, 1.0
          %v1001 = vadd.f32 %v956, 1.0
          %v1002 = vadd.f32 %v958, 1.0
          %v1003 = vadd.f32 %v960, 1.0
          %v1004 = vadd.f32 %v962, 1.0
          %v1005 = vadd.f32 %v964, 1.0
          %v1006 = vadd.f32 %v966, 1.0
          %v1007 = vadd.f32 %v968, 1.0
          %v1008 = vadd.f32 %v970, 1.0
          %v1009 = vadd.f32 %v972, 1.0
          %v1010 = vadd.f32 %v974, 1.0
          %v1011 = vadd.f32 %v976, 1.0
          %v1012 = vadd.f32 %v978, 1.0
          %v1013 = vadd.f32 %v980, 1.0
          %v1014 = vadd.f32 %v982, 1.0
          %v1015 = vrcp.pop %v983
          %v1016 = vmul.f32 1.0, %v1015
          %v1017 = vrcp.pop %v984
          %v1018 = vmul.f32 1.0, %v1017
          %v1019 = vrcp.pop %v985
          %v1020 = vmul.f32 1.0, %v1019
          %v1021 = vrcp.pop %v986
          %v1022 = vmul.f32 1.0, %v1021
          %v1023 = vrcp.pop %v987
          %v1024 = vmul.f32 1.0, %v1023
          %v1025 = vrcp.pop %v988
          %v1026 = vmul.f32 1.0, %v1025
          %v1027 = vrcp.pop %v989
          %v1028 = vmul.f32 1.0, %v1027
          %v1029 = vrcp.pop %v990
          %v1030 = vmul.f32 1.0, %v1029
          %v1031 = vrcp.pop %v991
          %v1032 = vmul.f32 1.0, %v1031
          %v1033 = vrcp.pop %v992
          %v1034 = vmul.f32 1.0, %v1033
          %v1035 = vrcp.pop %v993
          %v1036 = vmul.f32 1.0, %v1035
          %v1037 = vrcp.pop %v994
          %v1038 = vmul.f32 1.0, %v1037
          %v1039 = vrcp.pop %v995
          %v1040 = vmul.f32 1.0, %v1039
          %v1041 = vrcp.pop %v996
          %v1042 = vmul.f32 1.0, %v1041
          %v1043 = vrcp.pop %v997
          %v1044 = vmul.f32 1.0, %v1043
          %v1045 = vrcp.pop %v998
          %v1046 = vmul.f32 1.0, %v1045
          %v1047 = vrcp.pop %v999
          %v1048 = vmul.f32 1.0, %v1047
          %v1049 = vrcp.pop %v1000
          %v1050 = vmul.f32 1.0, %v1049
          %v1051 = vrcp.pop %v1001
          %v1052 = vmul.f32 1.0, %v1051
          %v1053 = vrcp.pop %v1002
          %v1054 = vmul.f32 1.0, %v1053
          %v1055 = vrcp.pop %v1003
          %v1056 = vmul.f32 1.0, %v1055
          %v1057 = vrcp.pop %v1004
          %v1058 = vmul.f32 1.0, %v1057
          %v1059 = vrcp.pop %v1005
          %v1060 = vmul.f32 1.0, %v1059
          %v1061 = vrcp.pop %v1006
          %v1062 = vmul.f32 1.0, %v1061
          %v1063 = vrcp.pop %v1007
          %v1064 = vmul.f32 1.0, %v1063
          %v1065 = vrcp.pop %v1008
          %v1066 = vmul.f32 1.0, %v1065
          %v1067 = vrcp.pop %v1009
          %v1068 = vmul.f32 1.0, %v1067
          %v1069 = vrcp.pop %v1010
          %v1070 = vmul.f32 1.0, %v1069
          %v1071 = vrcp.pop %v1011
          %v1072 = vmul.f32 1.0, %v1071
          %v1073 = vrcp.pop %v1012
          %v1074 = vmul.f32 1.0, %v1073
          %v1075 = vrcp.pop %v1013
          %v1076 = vmul.f32 1.0, %v1075
          %v1077 = vrcp.pop %v1014
          %v1078 = vmul.f32 1.0, %v1077
          %v1079 = vmul.f32 %v855, %v1016
          %v1080 = vmul.f32 %v856, %v1018
          %v1081 = vmul.f32 %v857, %v1020
          %v1082 = vmul.f32 %v858, %v1022
          %v1083 = vmul.f32 %v859, %v1024
          %v1084 = vmul.f32 %v860, %v1026
          %v1085 = vmul.f32 %v861, %v1028
          %v1086 = vmul.f32 %v862, %v1030
          %v1087 = vmul.f32 %v863, %v1032
          %v1088 = vmul.f32 %v864, %v1034
          %v1089 = vmul.f32 %v865, %v1036
          %v1090 = vmul.f32 %v866, %v1038
          %v1091 = vmul.f32 %v867, %v1040
          %v1092 = vmul.f32 %v868, %v1042
          %v1093 = vmul.f32 %v869, %v1044
          %v1094 = vmul.f32 %v870, %v1046
          %v1095 = vmul.f32 %v871, %v1048
          %v1096 = vmul.f32 %v872, %v1050
          %v1097 = vmul.f32 %v873, %v1052
          %v1098 = vmul.f32 %v874, %v1054
          %v1099 = vmul.f32 %v875, %v1056
          %v1100 = vmul.f32 %v876, %v1058
          %v1101 = vmul.f32 %v877, %v1060
          %v1102 = vmul.f32 %v878, %v1062
          %v1103 = vmul.f32 %v879, %v1064
          %v1104 = vmul.f32 %v880, %v1066
          %v1105 = vmul.f32 %v881, %v1068
          %v1106 = vmul.f32 %v882, %v1070
          %v1107 = vmul.f32 %v883, %v1072
          %v1108 = vmul.f32 %v884, %v1074
          %v1109 = vmul.f32 %v885, %v1076
          %v1110 = vmul.f32 %v886, %v1078
          %1111 = vst [vmem:[%s263] sm:$0xff] %v1079
          %1112 = vst [vmem:[%s263 + $0x8] sm:$0xff] %v1080
          %1113 = vst [vmem:[%s263 + $0x10] sm:$0xff] %v1081
          %1114 = vst [vmem:[%s263 + $0x18] sm:$0xff] %v1082
          %1115 = vst [vmem:[%s263 + $0x20] sm:$0xff] %v1083
          %1116 = vst [vmem:[%s263 + $0x28] sm:$0xff] %v1084
          %1117 = vst [vmem:[%s263 + $0x30] sm:$0xff] %v1085
          %1118 = vst [vmem:[%s263 + $0x38] sm:$0xff] %v1086
          %1119 = vst [vmem:[%s263 + $0x40] sm:$0xff] %v1087
          %1120 = vst [vmem:[%s263 + $0x48] sm:$0xff] %v1088
          %1121 = vst [vmem:[%s263 + $0x50] sm:$0xff] %v1089
          %1122 = vst [vmem:[%s263 + $0x58] sm:$0xff] %v1090
          %1123 = vst [vmem:[%s263 + $0x60] sm:$0xff] %v1091
          %1124 = vst [vmem:[%s263 + $0x68] sm:$0xff] %v1092
          %1125 = vst [vmem:[%s263 + $0x70] sm:$0xff] %v1093
          %1126 = vst [vmem:[%s263 + $0x78] sm:$0xff] %v1094
          %1127 = vst [vmem:[%s263 + $0x80] sm:$0xff] %v1095
          %1128 = vst [vmem:[%s263 + $0x88] sm:$0xff] %v1096
          %1129 = vst [vmem:[%s263 + $0x90] sm:$0xff] %v1097
          %1130 = vst [vmem:[%s263 + $0x98] sm:$0xff] %v1098
          %1131 = vst [vmem:[%s263 + $0xa0] sm:$0xff] %v1099
          %1132 = vst [vmem:[%s263 + $0xa8] sm:$0xff] %v1100
          %1133 = vst [vmem:[%s263 + $0xb0] sm:$0xff] %v1101
          %1134 = vst [vmem:[%s263 + $0xb8] sm:$0xff] %v1102
          %1135 = vst [vmem:[%s263 + $0xc0] sm:$0xff] %v1103
          %1136 = vst [vmem:[%s263 + $0xc8] sm:$0xff] %v1104
          %1137 = vst [vmem:[%s263 + $0xd0] sm:$0xff] %v1105
          %1138 = vst [vmem:[%s263 + $0xd8] sm:$0xff] %v1106
          %1139 = vst [vmem:[%s263 + $0xe0] sm:$0xff] %v1107
          %1140 = vst [vmem:[%s263 + $0xe8] sm:$0xff] %v1108
          %1141 = vst [vmem:[%s263 + $0xf0] sm:$0xff] %v1109
          %1142 = vst [vmem:[%s263 + $0xf8] sm:$0xff] %v1110
        $region44: #{tpu_custom_call.1} parent=35 // pred_fallthru
          _
        %s1143 = sand.u32 %s155, 1
        %s1144 = scalar_lea.sflag [#allocation4], %s1143
        %s1145 = sand.u32 %s155, 1
        %s1146 = smul.addr %s1145, 256
        %s1147 = scalar_lea.vmem [#allocation3], %s1146
        // Predicated region
        $region45: #{tpu_custom_call.1} parent=35 // pred_check
          %p1148 = pneg %p165
        $region46: #{tpu_custom_call.1} parent=35 // pred_check_branch
          %1150 = sbr.rel (%p1148) target = $region48
        $region47: #{tpu_custom_call.1} parent=35 // pred_region
          %s1151 = smul.u32 32, %s23
          %s1153 = ssub.s32 4096, 4096
          %1154 = vsyncadd %s1144, %s1153
          %s1155 = sadd.s32 %s24, %s1151
          %s1156 = smul.addr %s1155, 128
          %s1157 = scalar_lea.hbm %s4, %s1156
          %s1158 = sshll.u32 %s1147, 4
          %s1159 = int_to_ptr.vmem [resolvable:$true] %s1158
          %1164 = dma.vmem_to_hbm [thread:$0]  %s1159, 4096, %s1157, %s1144, 128, 128, 8
        $region48: #{tpu_custom_call.1} parent=35 // pred_fallthru
          _
      $region36: #{tpu_custom_call.1} parent=5 // pred_fallthru
        _
      %p1165 = scmp.le.s32.totalorder 2, %s13
      // Predicated region
      $region49: #{tpu_custom_call.1} parent=5 // pred_check
        %p1166 = pneg %p1165
      $region50: #{tpu_custom_call.1} parent=5 // pred_check_branch
        %1168 = sbr.rel (%p1166) target = $region52
      $region51: #{tpu_custom_call.1} parent=5 // pred_region
        %s1169 = ssub.s32 %s13, 2
        // Predicated region
        $region53: #{tpu_custom_call.1} parent=51 // pred_check
          %p1170 = pneg %p171
        $region54: #{tpu_custom_call.1} parent=51 // pred_check_branch
          %1172 = sbr.rel (%p1170) target = $region56
        $region55: #{tpu_custom_call.1} parent=51 // pred_region
          %s1173 = sand.u32 %s156, 1
          %s1174 = scalar_lea.sflag [#allocation4], %s1173
          %s1175 = sand.u32 %s156, 1
          %s1176 = smul.addr %s1175, 256
          %s1177 = scalar_lea.vmem [#allocation3], %s1176
          %1178 = dma.done %s1174, 4096
        $region56: #{tpu_custom_call.1} parent=51 // pred_fallthru
          _
      $region52: #{tpu_custom_call.1} parent=5 // pred_fallthru
        _
    $region6: #{tpu_custom_call.1} parent=1 // loop_footer
      %s17 = sadd.s32 1, %s13
    $region7: #{tpu_custom_call.1} parent=1 // loop_footer_branch
      %12 = sbr.rel target = $region3
    $region8: #{tpu_custom_call.1} parent=1 // loop_exit
      _
    %1179 = vsyncpa [#allocation4], 1
    %s1180 = scalar_lea.sflag [#allocation4], 1
    %1181 = vsyncpa %s1180, 1

</llo_original>
